<compile_context>
chip_gen: v5e
topology: v5e:2x2
jax: 0.10.0
libtpu: 0.0.40
codegen_flags: <defaults>
</compile_context>

<pallas_src>
import jax
import jax.numpy as jnp
from jax.experimental import pallas as pl
from jax.experimental.pallas import tpu as pltpu


def _elu(y):
    # exp only on the non-positive branch so large positive y can't overflow.
    return jnp.where(y > 0.0, y, jnp.exp(jnp.minimum(y, 0.0)) - 1.0)


def _dot(a, b):
    # bf16 operands, f32 accumulation: native single-pass MXU path.
    return jnp.dot(a.astype(jnp.bfloat16), b.astype(jnp.bfloat16),
                   preferred_element_type=jnp.float32)


def _make_fused_kernel(n_hg_layers, n_fc_rest):
    """Fused SGNN_addr_noAtt forward.

    Ref order (full-array VMEM refs):
      x_addr (Na, D), x_tx (Nt, D), adj_norm (Na, Nt), P (Na, Na),
      w_slab (Lw, D, D), b_slab (Lb, D), out (Na, D)

    Weight-slab order : han_w_tx, han_w_self, hg_theta*, w1x, w1het, w1hyp,
                        fc_rest*, fc_out
    Bias-slab order   : han_b, hg_b*, fc1_b, fc_rest*, fc_out_b
    """

    def kernel(xa_ref, xt_ref, adj_ref, p_ref, w_ref, b_ref, o_ref):
        wi = [0]
        bi = [0]

        def W():
            w = w_ref[wi[0]]          # static leading-index slice -> (D, D)
            wi[0] += 1
            return w

        def B():
            b = b_ref[bi[0]:bi[0] + 1, :]   # static slice -> (1, D)
            bi[0] += 1
            return b

        xa = xa_ref[...]
        xt = xt_ref[...]
        adj = adj_ref[...]
        p = p_ref[...]

        # ---- HANsBlock (simplified) ---------------------------------------
        # TODO(synk): HANConv node-level + semantic-level attention is
        # approximated by mean-normalized dense aggregation (HANsBlock source
        # not provided); structurally it is addr <- tx message passing plus a
        # self projection, followed by ELU.
        w_tx = W()
        w_self = W()
        b_han = B()
        het = _elu(_dot(adj, _dot(xt, w_tx)) + _dot(xa, w_self) + b_han)

        # ---- HypergraphsBlock (HypergraphConv, use_attention=False) --------
        # X' = ELU(P @ (X Theta) + b)  with  P = D^-1 H diag(W) B^-1 H^T
        # (bias added AFTER aggregation, matching PyG HypergraphConv).
        hyp = xa
        for _ in range(n_hg_layers):
            theta = W()
            b = B()
            hyp = _elu(_dot(p, _dot(hyp, theta)) + b)

        # ---- FCsBlock on cat([x_addr, het, hyp], dim=1) ---------------------
        # Concat folded into a split first-layer weight (no cross-lane concat).
        w1x, w1het, w1hyp, b1 = W(), W(), W(), B()
        z = _dot(xa, w1x) + _dot(het, w1het) + _dot(hyp, w1hyp) + b1
        z = jnp.maximum(z, 0.0)                      # ReLU hidden layer 1
        for _ in range(n_fc_rest):
            w = W()
            b = B()
            z = jnp.maximum(_dot(z, w) + b, 0.0)
        w_out, b_out = W(), B()
        o_ref[...] = (_dot(z, w_out) + b_out).astype(o_ref.dtype)

    return kernel


def _pad_to(a, shape):
    return jnp.pad(a, [(0, s - d) for d, s in zip(a.shape, shape)])


def sgnn_addr_noatt_forward(params, x_addr, x_tx, adj_norm, prop, n_classes):
    """Single gridless pallas_call covering the entire forward pass.

    `prop` is the precomputed hypergraph propagation operator
    P = H_left @ H_rightT  (exact reassociation of the per-layer chain).
    """
    n_addr, n_feat = x_addr.shape

    # Collect weights / biases in kernel execution order.
    w_list = [params["han_w_tx"], params["han_w_self"]]
    b_list = [params["han_b"]]
    for theta, b in params["hg_layers"]:
        w_list.append(theta)
        b_list.append(b)
    w1x, w1het, w1hyp, b1 = params["fc_first"]
    w_list += [w1x, w1het, w1hyp]
    b_list.append(b1)
    for w, b in params["fc_rest"]:
        w_list.append(w)
        b_list.append(b)
    w_out, b_out = params["fc_out"]
    w_list.append(w_out)
    b_list.append(b_out)

    # Common padded width D: every weight becomes a (D, D) tile, every
    # activation an (n_addr, D) tile.  Zero padding is exact through the net.
    d = max(n_feat, max(max(w.shape) for w in w_list))

    w_slab = jnp.stack([_pad_to(w.astype(jnp.float32), (d, d))
                        for w in w_list])                       # (Lw, D, D)
    b_slab = jnp.stack([_pad_to(b.reshape(-1).astype(jnp.float32), (d,))
                        for b in b_list])                       # (Lb, D)
    xa = _pad_to(x_addr.astype(jnp.float32), (n_addr, d))
    xt = _pad_to(x_tx.astype(jnp.float32), (x_tx.shape[0], d))

    kernel = _make_fused_kernel(len(params["hg_layers"]),
                                len(params["fc_rest"]))

    vmem = lambda: pl.BlockSpec(memory_space=pltpu.MemorySpace.VMEM)
    out = pl.pallas_call(
        kernel,
        out_shape=jax.ShapeDtypeStruct((n_addr, d), jnp.float32),
        in_specs=[vmem() for _ in range(6)],
        out_specs=vmem(),
    )(xa, xt, adj_norm.astype(jnp.float32), prop.astype(jnp.float32),
      w_slab, b_slab)

    return out[:, :n_classes]


# ----------------------------------------------------------------------------
# Deterministic parameter initialization
# ----------------------------------------------------------------------------
def _dense(key, fan_in, fan_out):
    w = jax.random.normal(key, (fan_in, fan_out), jnp.float32) / jnp.sqrt(
        jnp.asarray(fan_in, jnp.float32))
    b = jnp.zeros((fan_out,), jnp.float32)
    return w, b


def init_params(key, n_features, hetero_hidden, hyper_hidden, fcs_hidden,
                n_classes):
    keys = iter(jax.random.split(key, 64))
    p = {}

    # HAN block (simplified single layer to hetero_hidden[-1]).
    d_het = hetero_hidden[-1]
    p["han_w_tx"], _ = _dense(next(keys), n_features, d_het)
    p["han_w_self"], p["han_b"] = _dense(next(keys), n_features, d_het)

    # Hypergraph conv chain.
    hg = []
    d_in = n_features
    for d_out in hyper_hidden:
        hg.append(_dense(next(keys), d_in, d_out))
        d_in = d_out
    p["hg_layers"] = hg
    d_hyp = hyper_hidden[-1]

    # FC head: first layer split across the three concatenated inputs.
    assert len(fcs_hidden) >= 1
    h1 = fcs_hidden[0]
    w1x, b1 = _dense(next(keys), n_features, h1)
    w1het, _ = _dense(next(keys), d_het, h1)
    w1hyp, _ = _dense(next(keys), d_hyp, h1)
    p["fc_first"] = (w1x, w1het, w1hyp, b1)

    rest = []
    d_in = h1
    for h in fcs_hidden[1:]:
        rest.append(_dense(next(keys), d_in, h))
        d_in = h
    p["fc_rest"] = rest
    p["fc_out"] = _dense(next(keys), d_in, n_classes)
    return p


# ----------------------------------------------------------------------------
# Main
# ----------------------------------------------------------------------------
if __name__ == "__main__":
    N_ADDR, N_TX, F = 16, 12, 8
    HETERO_HIDDEN = (32,)          # hetero_gnns_hidden
    HYPER_HIDDEN = (32, 32)        # hyper_gnns_hidden
    FCS_HIDDEN = (32,)             # fcs_hidden
    N_CLASSES = 2
    M_HYPER, E_EDGES, NNZ = 6, 24, 20

    key = jax.random.PRNGKey(0)
    keys = jax.random.split(key, 10)

    # hetero_data: 'address' / 'tx' node features + tx -> address edges.
    x_addr = jax.random.normal(keys[0], (N_ADDR, F), jnp.float32)
    x_tx = jax.random.normal(keys[1], (N_TX, F), jnp.float32)
    src_tx = jax.random.randint(keys[2], (E_EDGES,), 0, N_TX)
    dst_addr = jax.random.randint(keys[3], (E_EDGES,), 0, N_ADDR)
    adj = jnp.zeros((N_ADDR, N_TX), jnp.float32).at[dst_addr, src_tx].set(1.0)
    # TODO(synk): isolated addresses receive zero tx messages here; verify
    # against HANConv behavior for nodes with no incoming edges.
    adj_norm = adj / jnp.maximum(adj.sum(axis=1, keepdims=True), 1.0)

    # hyper_data: hyperedge_index (2, nnz) + hyperedge_weight (M,).
    hyp_nodes = jax.random.randint(keys[4], (NNZ,), 0, N_ADDR)
    hyp_edges = jax.random.randint(keys[5], (NNZ,), 0, M_HYPER)
    hyperedge_weight = jnp.abs(jax.random.normal(keys[6], (M_HYPER,),
                                                 jnp.float32)) + 0.5

    # Dense incidence + degree normalization, then the fused propagation
    # operator P = D^-1 H diag(W) B^-1 H^T  (plain-JAX preprocessing).
    H = jnp.zeros((N_ADDR, M_HYPER), jnp.float32).at[hyp_nodes,
                                                     hyp_edges].set(1.0)
    d_node = (H * hyperedge_weight[None, :]).sum(axis=1)
    d_edge = H.sum(axis=0)
    H_left = H / jnp.maximum(d_node, 1e-12)[:, None]
    H_rightT = (H * (hyperedge_weight
                     / jnp.maximum(d_edge, 1e-12))[None, :]).T
    prop = H_left @ H_rightT                      # (N_ADDR, N_ADDR)

    params = init_params(keys[7], F, HETERO_HIDDEN, HYPER_HIDDEN, FCS_HIDDEN,
                         N_CLASSES)

    out = sgnn_addr_noatt_forward(params, x_addr, x_tx, adj_norm, prop,
                                  N_CLASSES)
    out = jax.block_until_ready(out)
    assert out.shape == (N_ADDR, N_CLASSES)
    assert bool(jnp.all(jnp.isfinite(out)))
    print("KERNEL_OK")
</pallas_src>

<mosaic_0001>
module attributes {stable_mosaic.version = 11 : i64} {
  func.func @kernel(%arg0: memref<16x32xf32, #tpu.memory_space<vmem>>, %arg1: memref<12x32xf32, #tpu.memory_space<vmem>>, %arg2: memref<16x12xf32, #tpu.memory_space<vmem>>, %arg3: memref<16x16xf32, #tpu.memory_space<vmem>>, %arg4: memref<8x32x32xf32, #tpu.memory_space<vmem>>, %arg5: memref<5x32xf32, #tpu.memory_space<vmem>>, %arg6: memref<16x32xf32, #tpu.memory_space<vmem>>) attributes {dimension_semantics = [], scalar_prefetch = 0 : i64, scratch_operands = 0 : i64, tpu.core_type = #tpu.core_type<tc>} {
    %c0 = arith.constant 0 : index
    %c0_0 = arith.constant 0 : index
    %0 = vector.load %arg0[%c0, %c0_0] : memref<16x32xf32, #tpu.memory_space<vmem>>, vector<16x32xf32>
    %c0_1 = arith.constant 0 : index
    %c0_2 = arith.constant 0 : index
    %1 = vector.load %arg1[%c0_1, %c0_2] : memref<12x32xf32, #tpu.memory_space<vmem>>, vector<12x32xf32>
    %c0_3 = arith.constant 0 : index
    %c0_4 = arith.constant 0 : index
    %2 = vector.load %arg2[%c0_3, %c0_4] : memref<16x12xf32, #tpu.memory_space<vmem>>, vector<16x12xf32>
    %c0_5 = arith.constant 0 : index
    %c0_6 = arith.constant 0 : index
    %3 = vector.load %arg3[%c0_5, %c0_6] : memref<16x16xf32, #tpu.memory_space<vmem>>, vector<16x16xf32>
    %c0_7 = arith.constant 0 : index
    %c0_8 = arith.constant 0 : index
    %c0_9 = arith.constant 0 : index
    %4 = vector.load %arg4[%c0_7, %c0_8, %c0_9] : memref<8x32x32xf32, #tpu.memory_space<vmem>>, vector<1x32x32xf32>
    %5 = vector.shape_cast %4 : vector<1x32x32xf32> to vector<32x32xf32>
    %c1 = arith.constant 1 : index
    %c0_10 = arith.constant 0 : index
    %c0_11 = arith.constant 0 : index
    %6 = vector.load %arg4[%c1, %c0_10, %c0_11] : memref<8x32x32xf32, #tpu.memory_space<vmem>>, vector<1x32x32xf32>
    %7 = vector.shape_cast %6 : vector<1x32x32xf32> to vector<32x32xf32>
    %c0_12 = arith.constant 0 : index
    %c0_13 = arith.constant 0 : index
    %8 = vector.load %arg5[%c0_12, %c0_13] : memref<5x32xf32, #tpu.memory_space<vmem>>, vector<1x32xf32>
    %9 = arith.truncf %1 : vector<12x32xf32> to vector<12x32xbf16>
    %10 = arith.truncf %5 : vector<32x32xf32> to vector<32x32xbf16>
    %cst = arith.constant dense<0.000000e+00> : vector<12x32xf32>
    %11 = tpu.matmul %9, %10, %cst {dimension_numbers = #tpu.dot_dimension_numbers<[1], [0], [0], [1], [0, 0, 1, 1], [], []>} : vector<12x32xbf16>, vector<32x32xbf16>, vector<12x32xf32> -> vector<12x32xf32>
    %12 = arith.truncf %2 : vector<16x12xf32> to vector<16x12xbf16>
    %13 = arith.truncf %11 : vector<12x32xf32> to vector<12x32xbf16>
    %cst_14 = arith.constant dense<0.000000e+00> : vector<16x32xf32>
    %14 = tpu.matmul %12, %13, %cst_14 {dimension_numbers = #tpu.dot_dimension_numbers<[1], [0], [0], [1], [0, 0, 1, 1], [], []>} : vector<16x12xbf16>, vector<12x32xbf16>, vector<16x32xf32> -> vector<16x32xf32>
    %15 = arith.truncf %0 : vector<16x32xf32> to vector<16x32xbf16>
    %16 = arith.truncf %7 : vector<32x32xf32> to vector<32x32xbf16>
    %cst_15 = arith.constant dense<0.000000e+00> : vector<16x32xf32>
    %17 = tpu.matmul %15, %16, %cst_15 {dimension_numbers = #tpu.dot_dimension_numbers<[1], [0], [0], [1], [0, 0, 1, 1], [], []>} : vector<16x32xbf16>, vector<32x32xbf16>, vector<16x32xf32> -> vector<16x32xf32>
    %18 = arith.addf %14, %17 : vector<16x32xf32>
    %19 = vector.broadcast %8 : vector<1x32xf32> to vector<16x32xf32>
    %20 = arith.addf %18, %19 : vector<16x32xf32>
    %cst_16 = arith.constant 0.000000e+00 : f32
    %21 = vector.broadcast %cst_16 : f32 to vector<16x32xf32>
    %22 = arith.cmpf ogt, %20, %21 : vector<16x32xf32>
    %cst_17 = arith.constant 0.000000e+00 : f32
    %23 = vector.broadcast %cst_17 : f32 to vector<16x32xf32>
    %24 = arith.minimumf %20, %23 : vector<16x32xf32>
    %25 = math.exp %24 : vector<16x32xf32>
    %cst_18 = arith.constant 1.000000e+00 : f32
    %26 = vector.broadcast %cst_18 : f32 to vector<16x32xf32>
    %27 = arith.subf %25, %26 : vector<16x32xf32>
    %28 = arith.select %22, %20, %27 : vector<16x32xi1>, vector<16x32xf32>
    %c2 = arith.constant 2 : index
    %c0_19 = arith.constant 0 : index
    %c0_20 = arith.constant 0 : index
    %29 = vector.load %arg4[%c2, %c0_19, %c0_20] : memref<8x32x32xf32, #tpu.memory_space<vmem>>, vector<1x32x32xf32>
    %30 = vector.shape_cast %29 : vector<1x32x32xf32> to vector<32x32xf32>
    %c1_21 = arith.constant 1 : index
    %c0_22 = arith.constant 0 : index
    %31 = vector.load %arg5[%c1_21, %c0_22] : memref<5x32xf32, #tpu.memory_space<vmem>>, vector<1x32xf32>
    %32 = arith.truncf %0 : vector<16x32xf32> to vector<16x32xbf16>
    %33 = arith.truncf %30 : vector<32x32xf32> to vector<32x32xbf16>
    %cst_23 = arith.constant dense<0.000000e+00> : vector<16x32xf32>
    %34 = tpu.matmul %32, %33, %cst_23 {dimension_numbers = #tpu.dot_dimension_numbers<[1], [0], [0], [1], [0, 0, 1, 1], [], []>} : vector<16x32xbf16>, vector<32x32xbf16>, vector<16x32xf32> -> vector<16x32xf32>
    %35 = arith.truncf %3 : vector<16x16xf32> to vector<16x16xbf16>
    %36 = arith.truncf %34 : vector<16x32xf32> to vector<16x32xbf16>
    %cst_24 = arith.constant dense<0.000000e+00> : vector<16x32xf32>
    %37 = tpu.matmul %35, %36, %cst_24 {dimension_numbers = #tpu.dot_dimension_numbers<[1], [0], [0], [1], [0, 0, 1, 1], [], []>} : vector<16x16xbf16>, vector<16x32xbf16>, vector<16x32xf32> -> vector<16x32xf32>
    %38 = vector.broadcast %31 : vector<1x32xf32> to vector<16x32xf32>
    %39 = arith.addf %37, %38 : vector<16x32xf32>
    %cst_25 = arith.constant 0.000000e+00 : f32
    %40 = vector.broadcast %cst_25 : f32 to vector<16x32xf32>
    %41 = arith.cmpf ogt, %39, %40 : vector<16x32xf32>
    %cst_26 = arith.constant 0.000000e+00 : f32
    %42 = vector.broadcast %cst_26 : f32 to vector<16x32xf32>
    %43 = arith.minimumf %39, %42 : vector<16x32xf32>
    %44 = math.exp %43 : vector<16x32xf32>
    %cst_27 = arith.constant 1.000000e+00 : f32
    %45 = vector.broadcast %cst_27 : f32 to vector<16x32xf32>
    %46 = arith.subf %44, %45 : vector<16x32xf32>
    %47 = arith.select %41, %39, %46 : vector<16x32xi1>, vector<16x32xf32>
    %c3 = arith.constant 3 : index
    %c0_28 = arith.constant 0 : index
    %c0_29 = arith.constant 0 : index
    %48 = vector.load %arg4[%c3, %c0_28, %c0_29] : memref<8x32x32xf32, #tpu.memory_space<vmem>>, vector<1x32x32xf32>
    %49 = vector.shape_cast %48 : vector<1x32x32xf32> to vector<32x32xf32>
    %c2_30 = arith.constant 2 : index
    %c0_31 = arith.constant 0 : index
    %50 = vector.load %arg5[%c2_30, %c0_31] : memref<5x32xf32, #tpu.memory_space<vmem>>, vector<1x32xf32>
    %51 = arith.truncf %47 : vector<16x32xf32> to vector<16x32xbf16>
    %52 = arith.truncf %49 : vector<32x32xf32> to vector<32x32xbf16>
    %cst_32 = arith.constant dense<0.000000e+00> : vector<16x32xf32>
    %53 = tpu.matmul %51, %52, %cst_32 {dimension_numbers = #tpu.dot_dimension_numbers<[1], [0], [0], [1], [0, 0, 1, 1], [], []>} : vector<16x32xbf16>, vector<32x32xbf16>, vector<16x32xf32> -> vector<16x32xf32>
    %54 = arith.truncf %3 : vector<16x16xf32> to vector<16x16xbf16>
    %55 = arith.truncf %53 : vector<16x32xf32> to vector<16x32xbf16>
    %cst_33 = arith.constant dense<0.000000e+00> : vector<16x32xf32>
    %56 = tpu.matmul %54, %55, %cst_33 {dimension_numbers = #tpu.dot_dimension_numbers<[1], [0], [0], [1], [0, 0, 1, 1], [], []>} : vector<16x16xbf16>, vector<16x32xbf16>, vector<16x32xf32> -> vector<16x32xf32>
    %57 = vector.broadcast %50 : vector<1x32xf32> to vector<16x32xf32>
    %58 = arith.addf %56, %57 : vector<16x32xf32>
    %cst_34 = arith.constant 0.000000e+00 : f32
    %59 = vector.broadcast %cst_34 : f32 to vector<16x32xf32>
    %60 = arith.cmpf ogt, %58, %59 : vector<16x32xf32>
    %cst_35 = arith.constant 0.000000e+00 : f32
    %61 = vector.broadcast %cst_35 : f32 to vector<16x32xf32>
    %62 = arith.minimumf %58, %61 : vector<16x32xf32>
    %63 = math.exp %62 : vector<16x32xf32>
    %cst_36 = arith.constant 1.000000e+00 : f32
    %64 = vector.broadcast %cst_36 : f32 to vector<16x32xf32>
    %65 = arith.subf %63, %64 : vector<16x32xf32>
    %66 = arith.select %60, %58, %65 : vector<16x32xi1>, vector<16x32xf32>
    %c4 = arith.constant 4 : index
    %c0_37 = arith.constant 0 : index
    %c0_38 = arith.constant 0 : index
    %67 = vector.load %arg4[%c4, %c0_37, %c0_38] : memref<8x32x32xf32, #tpu.memory_space<vmem>>, vector<1x32x32xf32>
    %68 = vector.shape_cast %67 : vector<1x32x32xf32> to vector<32x32xf32>
    %c5 = arith.constant 5 : index
    %c0_39 = arith.constant 0 : index
    %c0_40 = arith.constant 0 : index
    %69 = vector.load %arg4[%c5, %c0_39, %c0_40] : memref<8x32x32xf32, #tpu.memory_space<vmem>>, vector<1x32x32xf32>
    %70 = vector.shape_cast %69 : vector<1x32x32xf32> to vector<32x32xf32>
    %c6 = arith.constant 6 : index
    %c0_41 = arith.constant 0 : index
    %c0_42 = arith.constant 0 : index
    %71 = vector.load %arg4[%c6, %c0_41, %c0_42] : memref<8x32x32xf32, #tpu.memory_space<vmem>>, vector<1x32x32xf32>
    %72 = vector.shape_cast %71 : vector<1x32x32xf32> to vector<32x32xf32>
    %c3_43 = arith.constant 3 : index
    %c0_44 = arith.constant 0 : index
    %73 = vector.load %arg5[%c3_43, %c0_44] : memref<5x32xf32, #tpu.memory_space<vmem>>, vector<1x32xf32>
    %74 = arith.truncf %0 : vector<16x32xf32> to vector<16x32xbf16>
    %75 = arith.truncf %68 : vector<32x32xf32> to vector<32x32xbf16>
    %cst_45 = arith.constant dense<0.000000e+00> : vector<16x32xf32>
    %76 = tpu.matmul %74, %75, %cst_45 {dimension_numbers = #tpu.dot_dimension_numbers<[1], [0], [0], [1], [0, 0, 1, 1], [], []>} : vector<16x32xbf16>, vector<32x32xbf16>, vector<16x32xf32> -> vector<16x32xf32>
    %77 = arith.truncf %28 : vector<16x32xf32> to vector<16x32xbf16>
    %78 = arith.truncf %70 : vector<32x32xf32> to vector<32x32xbf16>
    %cst_46 = arith.constant dense<0.000000e+00> : vector<16x32xf32>
    %79 = tpu.matmul %77, %78, %cst_46 {dimension_numbers = #tpu.dot_dimension_numbers<[1], [0], [0], [1], [0, 0, 1, 1], [], []>} : vector<16x32xbf16>, vector<32x32xbf16>, vector<16x32xf32> -> vector<16x32xf32>
    %80 = arith.addf %76, %79 : vector<16x32xf32>
    %81 = arith.truncf %66 : vector<16x32xf32> to vector<16x32xbf16>
    %82 = arith.truncf %72 : vector<32x32xf32> to vector<32x32xbf16>
    %cst_47 = arith.constant dense<0.000000e+00> : vector<16x32xf32>
    %83 = tpu.matmul %81, %82, %cst_47 {dimension_numbers = #tpu.dot_dimension_numbers<[1], [0], [0], [1], [0, 0, 1, 1], [], []>} : vector<16x32xbf16>, vector<32x32xbf16>, vector<16x32xf32> -> vector<16x32xf32>
    %84 = arith.addf %80, %83 : vector<16x32xf32>
    %85 = vector.broadcast %73 : vector<1x32xf32> to vector<16x32xf32>
    %86 = arith.addf %84, %85 : vector<16x32xf32>
    %cst_48 = arith.constant 0.000000e+00 : f32
    %87 = vector.broadcast %cst_48 : f32 to vector<16x32xf32>
    %88 = arith.maximumf %86, %87 : vector<16x32xf32>
    %c7 = arith.constant 7 : index
    %c0_49 = arith.constant 0 : index
    %c0_50 = arith.constant 0 : index
    %89 = vector.load %arg4[%c7, %c0_49, %c0_50] : memref<8x32x32xf32, #tpu.memory_space<vmem>>, vector<1x32x32xf32>
    %90 = vector.shape_cast %89 : vector<1x32x32xf32> to vector<32x32xf32>
    %c4_51 = arith.constant 4 : index
    %c0_52 = arith.constant 0 : index
    %91 = vector.load %arg5[%c4_51, %c0_52] : memref<5x32xf32, #tpu.memory_space<vmem>>, vector<1x32xf32>
    %92 = arith.truncf %88 : vector<16x32xf32> to vector<16x32xbf16>
    %93 = arith.truncf %90 : vector<32x32xf32> to vector<32x32xbf16>
    %cst_53 = arith.constant dense<0.000000e+00> : vector<16x32xf32>
    %94 = tpu.matmul %92, %93, %cst_53 {dimension_numbers = #tpu.dot_dimension_numbers<[1], [0], [0], [1], [0, 0, 1, 1], [], []>} : vector<16x32xbf16>, vector<32x32xbf16>, vector<16x32xf32> -> vector<16x32xf32>
    %95 = vector.broadcast %91 : vector<1x32xf32> to vector<16x32xf32>
    %96 = arith.addf %94, %95 : vector<16x32xf32>
    %c0_54 = arith.constant 0 : index
    %c0_55 = arith.constant 0 : index
    %97 = vector.load %arg6[%c0_54, %c0_55] : memref<16x32xf32, #tpu.memory_space<vmem>>, vector<16x32xf32>
    tpu.vector_store %arg6[%c0_54, %c0_55], %96 {strides = array<i32>} : memref<16x32xf32, #tpu.memory_space<vmem>>, vector<16x32xf32>,
    return
  }
}

</mosaic_0001>

<llo_original>
// kernel: tpu_custom_call.1
$region0: #{tpu_custom_call.1}
  #allocation0 [shape = 'u32[]', space=smem, size = 0x4, offset = 0x4, fixed_abs, tag = 'smem constant byte address 0x4 - core index']
  #allocation1 [shape = 'u32[72,128]{1,0:T(1,128)}', space=vmem, size = 0x9000, scoped, tag = 'internal scratch']
  %s0 = inlined_call_operand.hbm [shape: f32[16,32], index: 0, kind: input, shape index: {}]
  %s1 = inlined_call_operand.hbm [shape: f32[12,32], index: 1, kind: input, shape index: {}]
  %s2 = inlined_call_operand.hbm [shape: f32[16,12], index: 2, kind: input, shape index: {}]
  %s3 = inlined_call_operand.hbm [shape: f32[16,16], index: 3, kind: input, shape index: {}]
  %s4 = inlined_call_operand.hbm [shape: f32[8,32,32], index: 4, kind: input, shape index: {}]
  %s5 = inlined_call_operand.hbm [shape: f32[5,32], index: 5, kind: input, shape index: {}]
  %s6 = inlined_call_operand.hbm [shape: f32[16,32], index: 6, kind: output, shape index: {}]
  %s7 = sld [smem:[#allocation0]]
  $region58: #{tpu_custom_call.1} parent=0
    _
  %s9 = ssub.s32 1, %s7
  %s10 = scalar_select 0, %s9, %s7
  $region1: #{tpu_custom_call.1} parent=0
    #allocation2 [shape = 'u8[8192]{0}', space=vmem, size = 0x2000, scoped, tag = 'input window, operand 0, single buffered']
    #allocation3 [shape = 's32[1]{0}', space=sflag, size = 0x4, scoped, tag = 'scoped memory for tpu_custom_call.1']
    #allocation4 [shape = 's32[1]{0}', space=sflag, size = 0x4, scoped, tag = 'scoped memory for tpu_custom_call.1']
    #allocation5 [shape = 'u8[8192]{0}', space=vmem, size = 0x2000, scoped, tag = 'input window, operand 1, single buffered']
    #allocation6 [shape = 's32[1]{0}', space=sflag, size = 0x4, scoped, tag = 'scoped memory for tpu_custom_call.1']
    #allocation7 [shape = 'u8[8192]{0}', space=vmem, size = 0x2000, scoped, tag = 'input window, operand 2, single buffered']
    #allocation8 [shape = 'u8[8192]{0}', space=vmem, size = 0x2000, scoped, tag = 'input window, operand 3, single buffered']
    #allocation9 [shape = 's32[1]{0}', space=sflag, size = 0x4, scoped, tag = 'scoped memory for tpu_custom_call.1']
    #allocation10 [shape = 'u8[131072]{0}', space=vmem, size = 0x20000, scoped, tag = 'input window, operand 4, single buffered']
    #allocation11 [shape = 'u8[4096]{0}', space=vmem, size = 0x1000, scoped, tag = 'input window, operand 5, single buffered']
    #allocation12 [shape = 's32[1]{0}', space=sflag, size = 0x4, scoped, tag = 'scoped memory for tpu_custom_call.1']
    #allocation13 [shape = 'u8[8192]{0}', space=vmem, size = 0x2000, scoped, tag = 'output window, operand 0, single buffered']
    %11 = vsyncpa [#allocation3], 0
    %12 = vsyncpa [#allocation6], 0
    %13 = vsyncpa [#allocation9], 0
    %14 = vsyncpa [#allocation12], 0
    %15 = vsyncpa [#allocation4], 0
    // Predicated region
    $region2: #{tpu_custom_call.1} parent=1 // pred_check
      _
    $region3: #{tpu_custom_call.1} parent=1 // pred_check_branch
      %17 = sbr.rel (0) target = $region5
    $region4: #{tpu_custom_call.1} parent=1 // pred_region
      %19 = vsyncadd [#allocation3], 0
      %s20 = sshll.u32 %s0, 4
      %s21 = int_to_ptr.hbm [resolvable:$true] %s20
      %s22 = sshll.u32 [#allocation2], 4
      %s23 = int_to_ptr.vmem [resolvable:$true] %s22
      %28 = dma.hbm_to_vmem [thread:$0]  %s21, 256, %s23, [#allocation3], 128, 128, 8
    $region5: #{tpu_custom_call.1} parent=1 // pred_fallthru
      _
    // Predicated region
    $region6: #{tpu_custom_call.1} parent=1 // pred_check
      _
    $region7: #{tpu_custom_call.1} parent=1 // pred_check_branch
      %30 = sbr.rel (0) target = $region9
    $region8: #{tpu_custom_call.1} parent=1 // pred_region
      %32 = vsyncadd [#allocation6], 0
      %s33 = sshll.u32 %s1, 4
      %s34 = int_to_ptr.hbm [resolvable:$true] %s33
      %s35 = sshll.u32 [#allocation5], 4
      %s36 = int_to_ptr.vmem [resolvable:$true] %s35
      %41 = dma.hbm_to_vmem [thread:$0]  %s34, 256, %s36, [#allocation6], 128, 128, 8
    $region9: #{tpu_custom_call.1} parent=1 // pred_fallthru
      _
    // Predicated region
    $region10: #{tpu_custom_call.1} parent=1 // pred_check
      _
    $region11: #{tpu_custom_call.1} parent=1 // pred_check_branch
      %43 = sbr.rel (0) target = $region13
    $region12: #{tpu_custom_call.1} parent=1 // pred_region
      %45 = vsyncadd [#allocation6], 0
      %s46 = sshll.u32 %s2, 4
      %s47 = int_to_ptr.hbm [resolvable:$true] %s46
      %s48 = sshll.u32 [#allocation7], 4
      %s49 = int_to_ptr.vmem [resolvable:$true] %s48
      %54 = dma.hbm_to_vmem [thread:$0]  %s47, 256, %s49, [#allocation6], 128, 128, 8
    $region13: #{tpu_custom_call.1} parent=1 // pred_fallthru
      _
    // Predicated region
    $region14: #{tpu_custom_call.1} parent=1 // pred_check
      _
    $region15: #{tpu_custom_call.1} parent=1 // pred_check_branch
      %56 = sbr.rel (0) target = $region17
    $region16: #{tpu_custom_call.1} parent=1 // pred_region
      %58 = vsyncadd [#allocation9], 0
      %s59 = sshll.u32 %s3, 4
      %s60 = int_to_ptr.hbm [resolvable:$true] %s59
      %s61 = sshll.u32 [#allocation8], 4
      %s62 = int_to_ptr.vmem [resolvable:$true] %s61
      %67 = dma.hbm_to_vmem [thread:$0]  %s60, 256, %s62, [#allocation9], 128, 128, 8
    $region17: #{tpu_custom_call.1} parent=1 // pred_fallthru
      _
    // Predicated region
    $region18: #{tpu_custom_call.1} parent=1 // pred_check
      _
    $region19: #{tpu_custom_call.1} parent=1 // pred_check_branch
      %69 = sbr.rel (0) target = $region21
    $region20: #{tpu_custom_call.1} parent=1 // pred_region
      %71 = vsyncadd [#allocation9], 0
      %s72 = sshll.u32 %s4, 4
      %s73 = int_to_ptr.hbm [resolvable:$true] %s72
      %s74 = sshll.u32 [#allocation10], 4
      %s75 = int_to_ptr.vmem [resolvable:$true] %s74
      %80 = dma.hbm_to_vmem [thread:$0]  %s73, 4096, %s75, [#allocation9], 128, 128, 8
    $region21: #{tpu_custom_call.1} parent=1 // pred_fallthru
      _
    // Predicated region
    $region22: #{tpu_custom_call.1} parent=1 // pred_check
      _
    $region23: #{tpu_custom_call.1} parent=1 // pred_check_branch
      %82 = sbr.rel (0) target = $region25
    $region24: #{tpu_custom_call.1} parent=1 // pred_region
      %84 = vsyncadd [#allocation12], 0
      %s86 = sshll.u32 %s5, 4
      %s87 = int_to_ptr.hbm [resolvable:$true] %s86
      %s88 = sshll.u32 [#allocation11], 4
      %s89 = int_to_ptr.vmem [resolvable:$true] %s88
      %91 = dma.hbm_to_vmem [thread:$0]  %s87, 128, %s89, [#allocation12]
    $region25: #{tpu_custom_call.1} parent=1 // pred_fallthru
      _
    // Predicated region
    $region26: #{tpu_custom_call.1} parent=1 // pred_check
      _
    $region27: #{tpu_custom_call.1} parent=1 // pred_check_branch
      %93 = sbr.rel (0) target = $region29
    $region28: #{tpu_custom_call.1} parent=1 // pred_region
      %95 = dma.done [#allocation3], 256
    $region29: #{tpu_custom_call.1} parent=1 // pred_fallthru
      _
    // Predicated region
    $region30: #{tpu_custom_call.1} parent=1 // pred_check
      _
    $region31: #{tpu_custom_call.1} parent=1 // pred_check_branch
      %97 = sbr.rel (0) target = $region33
    $region32: #{tpu_custom_call.1} parent=1 // pred_region
      %99 = dma.done [#allocation6], 256
    $region33: #{tpu_custom_call.1} parent=1 // pred_fallthru
      _
    // Predicated region
    $region34: #{tpu_custom_call.1} parent=1 // pred_check
      _
    $region35: #{tpu_custom_call.1} parent=1 // pred_check_branch
      %101 = sbr.rel (0) target = $region37
    $region36: #{tpu_custom_call.1} parent=1 // pred_region
      %103 = dma.done [#allocation6], 256
    $region37: #{tpu_custom_call.1} parent=1 // pred_fallthru
      _
    // Predicated region
    $region38: #{tpu_custom_call.1} parent=1 // pred_check
      _
    $region39: #{tpu_custom_call.1} parent=1 // pred_check_branch
      %105 = sbr.rel (0) target = $region41
    $region40: #{tpu_custom_call.1} parent=1 // pred_region
      %107 = dma.done [#allocation9], 256
    $region41: #{tpu_custom_call.1} parent=1 // pred_fallthru
      _
    // Predicated region
    $region42: #{tpu_custom_call.1} parent=1 // pred_check
      _
    $region43: #{tpu_custom_call.1} parent=1 // pred_check_branch
      %109 = sbr.rel (0) target = $region45
    $region44: #{tpu_custom_call.1} parent=1 // pred_region
      %111 = dma.done [#allocation9], 4096
    $region45: #{tpu_custom_call.1} parent=1 // pred_fallthru
      _
    // Predicated region
    $region46: #{tpu_custom_call.1} parent=1 // pred_check
      _
    $region47: #{tpu_custom_call.1} parent=1 // pred_check_branch
      %113 = sbr.rel (0) target = $region49
    $region48: #{tpu_custom_call.1} parent=1 // pred_region
      %115 = dma.done [#allocation12], 128
    $region49: #{tpu_custom_call.1} parent=1 // pred_fallthru
      _
    %v117 = vld [vmem:[#allocation2] sm:$0xff]
    %v118 = vld [vmem:[#allocation2 + $0x8] sm:$0xff]
    %v119 = vld [vmem:[#allocation5] sm:$0xff]
    %v120 = vld [vmem:[#allocation5 + $0x8] sm:$0xf]
    %v121 = vld [vmem:[#allocation7] sm:$0xff]
    %v122 = vld [vmem:[#allocation7 + $0x8] sm:$0xff]
    %v123 = vld [vmem:[#allocation8] sm:$0xff]
    %v124 = vld [vmem:[#allocation8 + $0x8] sm:$0xff]
    %v125 = vld [vmem:[#allocation10] sm:$0xff]
    %v126 = vld [vmem:[#allocation10 + $0x8] sm:$0xff]
    %v127 = vld [vmem:[#allocation10 + $0x10] sm:$0xff]
    %v128 = vld [vmem:[#allocation10 + $0x18] sm:$0xff]
    %s129 = scalar_lea.vmem [#allocation10], 32
    %v130 = vld [vmem:[%s129] sm:$0xff]
    %v131 = vld [vmem:[%s129 + $0x8] sm:$0xff]
    %v132 = vld [vmem:[%s129 + $0x10] sm:$0xff]
    %v133 = vld [vmem:[%s129 + $0x18] sm:$0xff]
    %v134 = vld [vmem:[#allocation11] sm:$0x1]
    %v135 = vpack.c.bf16 %v120, %v119
    %v136 = vpack.c.bf16 %v126, %v125
    %v137 = vpack.c.bf16 %v128, %v127
    %vm138 = vcmask 261120
    %v140 = vsel %vm138, %v135, 0
    %142 = vmatpush.bf16.msra.mxu0 0
    %143 = vmatpush.bf16.msra.mxu0 0
    %144 = vmatpush.bf16.msra.mxu0 0
    %145 = vmatpush.bf16.msra.mxu0 0
    %146 = vmatpush.bf16.msra.mxu0 0
    %147 = vmatpush.bf16.msra.mxu0 0
    %148 = vmatpush.bf16.msra.mxu0 %v137
    %149 = vmatpush.bf16.msra.mxu0 %v136
    %150 = vmatmul.bf16.gmra.mxu0 %v140
    %v151 = vpop.f32.mrf.mxu0
    %v152 = vadd.f32 0.0, %v151
    %v153 = vpop.f32.mrf.mxu0
    %v154 = vadd.f32 0.0, %v153
    %155 = vdwg.mxu0
    %v156 = vpack.c.bf16 %v122, %v121
    %v157 = vpack.c.bf16 %v154, %v152
    %v158 = vpack.c.bf16 %v118, %v117
    %v159 = vpack.c.bf16 %v131, %v130
    %v160 = vpack.c.bf16 %v133, %v132
    %v162 = vsel %vm138, %v158, 0
    %164 = vmatpush.bf16.msra.mxu0 0
    %165 = vmatpush.bf16.msra.mxu0 0
    %166 = vmatpush.bf16.msra.mxu0 0
    %167 = vmatpush.bf16.msra.mxu0 0
    %168 = vmatpush.bf16.msra.mxu0 0
    %169 = vmatpush.bf16.msra.mxu0 0
    %170 = vmatpush.bf16.msra.mxu0 %v160
    %171 = vmatpush.bf16.msra.mxu0 %v159
    %172 = vmatmul.bf16.gmra.mxu0 %v162
    %v173 = vpop.f32.mrf.mxu0
    %v174 = vadd.f32 0.0, %v173
    %v175 = vpop.f32.mrf.mxu0
    %v176 = vadd.f32 0.0, %v175
    %177 = vdwg.mxu0
    %vm178 = vcmask 97280
    %v180 = vsel %vm178, %v156, 0
    %vm182 = vcmask 1045504
    %v184 = vsel %vm182, %v157, 0
    %186 = vmatpush.bf16.msra.mxu0 0
    %187 = vmatpush.bf16.msra.mxu0 0
    %188 = vmatpush.bf16.msra.mxu0 0
    %189 = vmatpush.bf16.msra.mxu0 0
    %190 = vmatpush.bf16.msra.mxu0 0
    %191 = vmatpush.bf16.msra.mxu0 0
    %192 = vmatpush.bf16.msra.mxu0 0
    %193 = vmatpush.bf16.msra.mxu0 %v184
    %194 = vmatmul.bf16.gmra.mxu0 %v180
    %v195 = vpop.f32.mrf.mxu0
    %v196 = vadd.f32 %v174, %v195
    %v197 = vpop.f32.mrf.mxu0
    %v198 = vadd.f32 %v176, %v197
    %199 = vdwg.mxu0
    %v200 = vperm.slane %v134, 0
    %v201 = vadd.f32 %v196, %v200
    %v202 = vadd.f32 %v198, %v200
    %vm203 = vcmp.gt.f32.partialorder %v201, 0.0
    %vm204 = vcmp.gt.f32.partialorder %v202, 0.0
    %v205 = vmin.f32 %v201, 0.0
    %v206 = vmin.f32 %v202, 0.0
    %v207 = vmul.f32 %v205, 1.442695
    %v208 = vpow.pop %v207
    %v209 = vmul.f32 %v206, 1.442695
    %v210 = vpow.pop %v209
    %v211 = vsub.f32 %v208, 1.0
    %v212 = vsub.f32 %v210, 1.0
    %v213 = vsel %vm203, %v201, %v211
    %v214 = vsel %vm204, %v202, %v212
    %s215 = scalar_lea.vmem [#allocation10], 64
    %v216 = vld [vmem:[%s215] sm:$0xff]
    %v217 = vld [vmem:[%s215 + $0x8] sm:$0xff]
    %v218 = vld [vmem:[%s215 + $0x10] sm:$0xff]
    %v219 = vld [vmem:[%s215 + $0x18] sm:$0xff]
    %v220 = vld [vmem:[#allocation11 + $0x1] sm:$0x1]
    %v221 = vpack.c.bf16 %v217, %v216
    %v222 = vpack.c.bf16 %v219, %v218
    %223 = vmatpush.bf16.msra.mxu0 0
    %224 = vmatpush.bf16.msra.mxu0 0
    %225 = vmatpush.bf16.msra.mxu0 0
    %226 = vmatpush.bf16.msra.mxu0 0
    %227 = vmatpush.bf16.msra.mxu0 0
    %228 = vmatpush.bf16.msra.mxu0 0
    %229 = vmatpush.bf16.msra.mxu0 %v222
    %230 = vmatpush.bf16.msra.mxu0 %v221
    %231 = vmatmul.bf16.gmra.mxu0 %v162
    %v232 = vpop.f32.mrf.mxu0
    %v233 = vadd.f32 0.0, %v232
    %v234 = vpop.f32.mrf.mxu0
    %v235 = vadd.f32 0.0, %v234
    %236 = vdwg.mxu0
    %v237 = vpack.c.bf16 %v124, %v123
    %v238 = vpack.c.bf16 %v235, %v233
    %v239 = vperm.slane %v220, 0
    %vm240 = vcmask 130048
    %v242 = vsel %vm240, %v237, 0
    %244 = vmatpush.bf16.msra.mxu0 0
    %245 = vmatpush.bf16.msra.mxu0 0
    %246 = vmatpush.bf16.msra.mxu0 0
    %247 = vmatpush.bf16.msra.mxu0 0
    %248 = vmatpush.bf16.msra.mxu0 0
    %249 = vmatpush.bf16.msra.mxu0 0
    %250 = vmatpush.bf16.msra.mxu0 0
    %251 = vmatpush.bf16.msra.mxu0 %v238
    %252 = vmatmul.bf16.gmra.mxu0 %v242
    %v253 = vpop.f32.mrf.mxu0
    %v254 = vadd.f32 %v239, %v253
    %v255 = vpop.f32.mrf.mxu0
    %v256 = vadd.f32 %v239, %v255
    %257 = vdwg.mxu0
    %vm258 = vcmp.gt.f32.partialorder %v254, 0.0
    %vm259 = vcmp.gt.f32.partialorder %v256, 0.0
    %v260 = vmin.f32 %v254, 0.0
    %v261 = vmin.f32 %v256, 0.0
    %v262 = vmul.f32 %v260, 1.442695
    %v263 = vpow.pop %v262
    %v264 = vmul.f32 %v261, 1.442695
    %v265 = vpow.pop %v264
    %v266 = vsub.f32 %v263, 1.0
    %v267 = vsub.f32 %v265, 1.0
    %v268 = vsel %vm258, %v254, %v266
    %v269 = vsel %vm259, %v256, %v267
    %s270 = scalar_lea.vmem [#allocation10], 96
    %v271 = vld [vmem:[%s270] sm:$0xff]
    %v272 = vld [vmem:[%s270 + $0x8] sm:$0xff]
    %v273 = vld [vmem:[%s270 + $0x10] sm:$0xff]
    %v274 = vld [vmem:[%s270 + $0x18] sm:$0xff]
    %v275 = vld [vmem:[#allocation11 + $0x2] sm:$0x1]
    %v276 = vpack.c.bf16 %v269, %v268
    %v277 = vpack.c.bf16 %v272, %v271
    %v278 = vpack.c.bf16 %v274, %v273
    %v280 = vsel %vm138, %v276, 0
    %282 = vmatpush.bf16.msra.mxu0 0
    %283 = vmatpush.bf16.msra.mxu0 0
    %284 = vmatpush.bf16.msra.mxu0 0
    %285 = vmatpush.bf16.msra.mxu0 0
    %286 = vmatpush.bf16.msra.mxu0 0
    %287 = vmatpush.bf16.msra.mxu0 0
    %288 = vmatpush.bf16.msra.mxu0 %v278
    %289 = vmatpush.bf16.msra.mxu0 %v277
    %290 = vmatmul.bf16.gmra.mxu0 %v280
    %v291 = vpop.f32.mrf.mxu0
    %v292 = vadd.f32 0.0, %v291
    %v293 = vpop.f32.mrf.mxu0
    %v294 = vadd.f32 0.0, %v293
    %295 = vdwg.mxu0
    %v296 = vpack.c.bf16 %v294, %v292
    %v297 = vperm.slane %v275, 0
    %298 = vmatpush.bf16.msra.mxu0 0
    %299 = vmatpush.bf16.msra.mxu0 0
    %300 = vmatpush.bf16.msra.mxu0 0
    %301 = vmatpush.bf16.msra.mxu0 0
    %302 = vmatpush.bf16.msra.mxu0 0
    %303 = vmatpush.bf16.msra.mxu0 0
    %304 = vmatpush.bf16.msra.mxu0 0
    %305 = vmatpush.bf16.msra.mxu0 %v296
    %306 = vmatmul.bf16.gmra.mxu0 %v242
    %v307 = vpop.f32.mrf.mxu0
    %v308 = vadd.f32 %v297, %v307
    %v309 = vpop.f32.mrf.mxu0
    %v310 = vadd.f32 %v297, %v309
    %311 = vdwg.mxu0
    %vm312 = vcmp.gt.f32.partialorder %v308, 0.0
    %vm313 = vcmp.gt.f32.partialorder %v310, 0.0
    %v314 = vmin.f32 %v308, 0.0
    %v315 = vmin.f32 %v310, 0.0
    %v316 = vmul.f32 %v314, 1.442695
    %v317 = vpow.pop %v316
    %v318 = vmul.f32 %v315, 1.442695
    %v319 = vpow.pop %v318
    %v320 = vsub.f32 %v317, 1.0
    %v321 = vsub.f32 %v319, 1.0
    %v322 = vsel %vm312, %v308, %v320
    %v323 = vsel %vm313, %v310, %v321
    %s324 = scalar_lea.vmem [#allocation10], 128
    %v325 = vld [vmem:[%s324] sm:$0xff]
    %v326 = vld [vmem:[%s324 + $0x8] sm:$0xff]
    %v327 = vld [vmem:[%s324 + $0x10] sm:$0xff]
    %v328 = vld [vmem:[%s324 + $0x18] sm:$0xff]
    %s329 = scalar_lea.vmem [#allocation10], 160
    %v330 = vld [vmem:[%s329] sm:$0xff]
    %v331 = vld [vmem:[%s329 + $0x8] sm:$0xff]
    %v332 = vld [vmem:[%s329 + $0x10] sm:$0xff]
    %v333 = vld [vmem:[%s329 + $0x18] sm:$0xff]
    %s334 = scalar_lea.vmem [#allocation10], 192
    %v335 = vld [vmem:[%s334] sm:$0xff]
    %v336 = vld [vmem:[%s334 + $0x8] sm:$0xff]
    %v337 = vld [vmem:[%s334 + $0x10] sm:$0xff]
    %v338 = vld [vmem:[%s334 + $0x18] sm:$0xff]
    %v339 = vld [vmem:[#allocation11 + $0x3] sm:$0x1]
    %v340 = vpack.c.bf16 %v326, %v325
    %v341 = vpack.c.bf16 %v328, %v327
    %v342 = vpack.c.bf16 %v214, %v213
    %v343 = vpack.c.bf16 %v331, %v330
    %v344 = vpack.c.bf16 %v333, %v332
    %v346 = vsel %vm138, %v342, 0
    %348 = vmatpush.bf16.msra.mxu0 0
    %349 = vmatpush.bf16.msra.mxu0 0
    %350 = vmatpush.bf16.msra.mxu0 0
    %351 = vmatpush.bf16.msra.mxu0 0
    %352 = vmatpush.bf16.msra.mxu0 0
    %353 = vmatpush.bf16.msra.mxu0 0
    %354 = vmatpush.bf16.msra.mxu0 %v344
    %355 = vmatpush.bf16.msra.mxu0 %v343
    %356 = vmatmul.bf16.gmra.mxu0 %v346
    %v357 = vpop.f32.mrf.mxu0
    %v358 = vadd.f32 0.0, %v357
    %v359 = vpop.f32.mrf.mxu0
    %v360 = vadd.f32 0.0, %v359
    %361 = vdwg.mxu0
    %362 = vmatpush.bf16.msra.mxu0 0
    %363 = vmatpush.bf16.msra.mxu0 0
    %364 = vmatpush.bf16.msra.mxu0 0
    %365 = vmatpush.bf16.msra.mxu0 0
    %366 = vmatpush.bf16.msra.mxu0 0
    %367 = vmatpush.bf16.msra.mxu0 0
    %368 = vmatpush.bf16.msra.mxu0 %v341
    %369 = vmatpush.bf16.msra.mxu0 %v340
    %370 = vmatmul.bf16.gmra.mxu0 %v162
    %v371 = vpop.f32.mrf.mxu0
    %v372 = vadd.f32 %v358, %v371
    %v373 = vpop.f32.mrf.mxu0
    %v374 = vadd.f32 %v360, %v373
    %375 = vdwg.mxu0
    %v376 = vpack.c.bf16 %v323, %v322
    %v377 = vpack.c.bf16 %v336, %v335
    %v378 = vpack.c.bf16 %v338, %v337
    %v380 = vsel %vm138, %v376, 0
    %382 = vmatpush.bf16.msra.mxu0 0
    %383 = vmatpush.bf16.msra.mxu0 0
    %384 = vmatpush.bf16.msra.mxu0 0
    %385 = vmatpush.bf16.msra.mxu0 0
    %386 = vmatpush.bf16.msra.mxu0 0
    %387 = vmatpush.bf16.msra.mxu0 0
    %388 = vmatpush.bf16.msra.mxu0 %v378
    %389 = vmatpush.bf16.msra.mxu0 %v377
    %390 = vmatmul.bf16.gmra.mxu0 %v380
    %v391 = vpop.f32.mrf.mxu0
    %v392 = vadd.f32 0.0, %v391
    %v393 = vpop.f32.mrf.mxu0
    %v394 = vadd.f32 0.0, %v393
    %395 = vdwg.mxu0
    %v396 = vadd.f32 %v372, %v392
    %v397 = vadd.f32 %v374, %v394
    %v398 = vperm.slane %v339, 0
    %v399 = vadd.f32 %v396, %v398
    %v400 = vadd.f32 %v397, %v398
    %v401 = vmax.f32 %v399, 0.0
    %v402 = vmax.f32 %v400, 0.0
    %s403 = scalar_lea.vmem [#allocation10], 224
    %v404 = vld [vmem:[%s403] sm:$0xff]
    %v405 = vld [vmem:[%s403 + $0x8] sm:$0xff]
    %v406 = vld [vmem:[%s403 + $0x10] sm:$0xff]
    %v407 = vld [vmem:[%s403 + $0x18] sm:$0xff]
    %v408 = vld [vmem:[#allocation11 + $0x4] sm:$0x1]
    %v409 = vpack.c.bf16 %v402, %v401
    %v410 = vpack.c.bf16 %v405, %v404
    %v411 = vpack.c.bf16 %v407, %v406
    %v412 = vperm.slane %v408, 0
    %v414 = vsel %vm138, %v409, 0
    %416 = vmatpush.bf16.msra.mxu0 0
    %417 = vmatpush.bf16.msra.mxu0 0
    %418 = vmatpush.bf16.msra.mxu0 0
    %419 = vmatpush.bf16.msra.mxu0 0
    %420 = vmatpush.bf16.msra.mxu0 0
    %421 = vmatpush.bf16.msra.mxu0 0
    %422 = vmatpush.bf16.msra.mxu0 %v411
    %423 = vmatpush.bf16.msra.mxu0 %v410
    %424 = vmatmul.bf16.gmra.mxu0 %v414
    %v425 = vpop.f32.mrf.mxu0
    %v426 = vadd.f32 %v412, %v425
    %v427 = vpop.f32.mrf.mxu0
    %v428 = vadd.f32 %v412, %v427
    %429 = vdwg.mxu0
    %430 = vst.msk [vmem:[#allocation13] sm:$0xff] %vm138, %v426
    %431 = vst.msk [vmem:[#allocation13 + $0x8] sm:$0xff] %vm138, %v428
    // Predicated region
    $region50: #{tpu_custom_call.1} parent=1 // pred_check
      _
    $region51: #{tpu_custom_call.1} parent=1 // pred_check_branch
      %433 = sbr.rel (0) target = $region53
    $region52: #{tpu_custom_call.1} parent=1 // pred_region
      %435 = vsyncadd [#allocation4], 0
      %s436 = sshll.u32 [#allocation13], 4
      %s437 = int_to_ptr.vmem [resolvable:$true] %s436
      %s438 = sshll.u32 %s6, 4
      %s439 = int_to_ptr.hbm [resolvable:$true] %s438
      %444 = dma.vmem_to_hbm [thread:$0]  %s437, 256, %s439, [#allocation4], 128, 128, 8
    $region53: #{tpu_custom_call.1} parent=1 // pred_fallthru
      _
    // Predicated region
    $region54: #{tpu_custom_call.1} parent=1 // pred_check
      _
    $region55: #{tpu_custom_call.1} parent=1 // pred_check_branch
      %446 = sbr.rel (0) target = $region57
    $region56: #{tpu_custom_call.1} parent=1 // pred_region
      %448 = dma.done [#allocation4], 256
    $region57: #{tpu_custom_call.1} parent=1 // pred_fallthru
      _
    %449 = vsyncpa [#allocation3], 1
    %450 = vsyncpa [#allocation6], 1
    %451 = vsyncpa [#allocation9], 1
    %452 = vsyncpa [#allocation12], 1
    %453 = vsyncpa [#allocation4], 1

</llo_original>
